<compile_context>
chip_gen: v7x
topology: tpu7x:2x2x1
jax: 0.10.0
libtpu: 0.0.40
codegen_flags: <defaults>
</compile_context>

<pallas_src>
import functools

import jax
import jax.numpy as jnp
from jax import lax
from jax.experimental import pallas as pl
from jax.experimental.pallas import tpu as pltpu


def _round_up(x, m):
    return ((x + m - 1) // m) * m


def _vmem_budget_and_limit():
    """Generation-aware VMEM sizing: budget ~ capacity/4 for the pipelined
    input/output buffers, limit ~ capacity/2 passed to the compiler."""
    cap = 64 * 1024 * 1024  # conservative fallback (v7x per-TC physical VMEM)
    try:
        info = pltpu.get_tpu_info()
        cap = int(getattr(info, "vmem_capacity_bytes", cap)) or cap
    except Exception:
        pass
    return cap // 4, cap // 2


def _pick_block_b(batch, n_in2, n_out2, itemsize, vmem_budget):
    """Pick the batch-slab size from the real VMEM footprint of the lane-dense
    layout, accounting for (8,128) tiling (last dim padded to 128 lanes and
    block_b kept a multiple of 8)."""
    # Double-buffered input block + double-buffered output block, per element.
    per_elem = 2 * (_round_up(n_in2, 128) + _round_up(n_out2, 128)) * itemsize
    bb = max(8, vmem_budget // per_elem)

    # Keep >= 2 grid steps (both v7x TensorCores busy) only when each step
    # still moves >= ~1 MiB of HBM traffic; never shrink below that floor.
    traffic_floor = max(8, (1 << 20) // ((n_in2 + n_out2) * itemsize))
    if batch >= 2 * traffic_floor:
        bb = min(bb, _round_up(pl.cdiv(batch, 2), 8))

    bb = min(bb, _round_up(batch, 8))
    bb = max(8, (bb // 8) * 8)  # sublane alignment for the (8,128) constraint
    return int(bb)


def _bimap_kernel(x_ref, wk_ref, o_ref):
    # x_ref:  (block_b, n_in*n_in)   lane-dense flattened SPD inputs
    # wk_ref: (n_out*n_out, n_in*n_in)  kron(W, W), same block every step
    # o_ref:  (block_b, n_out*n_out)
    o_ref[...] = lax.dot_general(
        x_ref[...],
        wk_ref[...],
        dimension_numbers=(((1,), (1,)), ((), ())),   # NT: contract last dims
        preferred_element_type=jnp.float32,
    ).astype(o_ref.dtype)


@functools.partial(jax.jit, static_argnames=("block_b",))
def bimap(x, w, *, block_b=None):
    """Apply Z_b = W @ X_b @ W^T for each batch element b.

    x: (B, n_in, n_in), w: (n_out, n_in) -> (B, n_out, n_out)
    """
    assert x.ndim == 3 and x.shape[-1] == x.shape[-2]
    B, n_in, _ = x.shape
    n_out, n_in_w = w.shape
    assert n_in_w == n_in
    n_in2, n_out2 = n_in * n_in, n_out * n_out

    itemsize = jnp.dtype(x.dtype).itemsize
    vmem_budget, vmem_limit = _vmem_budget_and_limit()
    if block_b is None:
        block_b = _pick_block_b(B, n_in2, n_out2, itemsize, vmem_budget)

    n_blocks = pl.cdiv(B, block_b)
    b_pad = n_blocks * block_b

    # Lane-dense input: (B, n_in^2); zero-pad the batch (kron(W,W) @ 0 = 0,
    # padded rows are sliced off below).
    x_flat = x.reshape(B, n_in2)
    if b_pad != B:
        x_flat = jnp.pad(x_flat, ((0, b_pad - B), (0, 0)))

    # Fold W into a single GEMM operand:
    #   Wk[o*n_out + p, i*n_in + j] = W[o, i] * W[p, j]   (== kron(W, W))
    wk = jnp.einsum("oi,pj->opij", w, w).reshape(n_out2, n_in2).astype(x.dtype)

    flops = 2 * b_pad * n_out2 * n_in2
    bytes_accessed = itemsize * (b_pad * n_in2 + n_out2 * n_in2 + b_pad * n_out2)

    out = pl.pallas_call(
        _bimap_kernel,
        out_shape=jax.ShapeDtypeStruct((b_pad, n_out2), x.dtype),
        grid_spec=pl.GridSpec(
            grid=(n_blocks,),
            in_specs=[
                pl.BlockSpec((block_b, n_in2), lambda b: (b, 0)),
                pl.BlockSpec((n_out2, n_in2), lambda b: (0, 0)),
            ],
            # Lane-dense output slab; last dim equals the full array dim.
            out_specs=pl.BlockSpec((block_b, n_out2), lambda b: (b, 0)),
        ),
        compiler_params=pltpu.CompilerParams(
            dimension_semantics=("parallel",),
            vmem_limit_bytes=vmem_limit,
        ),
        cost_estimate=pl.CostEstimate(
            flops=flops, transcendentals=0, bytes_accessed=bytes_accessed
        ),
    )(x_flat, wk)

    if b_pad != B:
        out = out[:B]
    return out.reshape(B, n_out, n_out)


def bimap_any_batch(x, w):
    """Handle arbitrary leading batch dims (*, n_in, n_in) -> (*, n_out, n_out)."""
    lead = x.shape[:-2]
    n_in = x.shape[-1]
    n_out = w.shape[0]
    xb = x.reshape((-1, n_in, n_in))
    zb = bimap(xb, w)
    return zb.reshape(lead + (n_out, n_out))


def make_semi_orthogonal_weight(key, out_spatial, in_spatial, dtype=jnp.float32):
    """Deterministic analogue of torch.nn.init.orthogonal_: rows of W are
    orthonormal (assumes out_spatial <= in_spatial)."""
    # TODO(synk): the torch module's trainable orthogonal parametrization is a
    # host-side init/constraint, not part of the forward kernel.
    a = jax.random.normal(key, (in_spatial, out_spatial), dtype=jnp.float32)
    q, _ = jnp.linalg.qr(a)            # (in_spatial, out_spatial), orthonormal cols
    return q.T.astype(dtype)           # (out_spatial, in_spatial), orthonormal rows


def make_spd_batch(key, lead, n, dtype=jnp.float32):
    a = jax.random.normal(key, tuple(lead) + (n, n), dtype=jnp.float32)
    spd = jnp.einsum("...ij,...kj->...ik", a, a) + n * jnp.eye(n)
    return spd.astype(dtype)


if __name__ == "__main__":
    key = jax.random.PRNGKey(0)
    kw, kx = jax.random.split(key)

    batch, channels = 2, 4
    in_spatial, out_spatial = 16, 8

    # Keep f32 end-to-end here so the tolerance is meaningful; cast x / w to
    # bfloat16 at this boundary on v5e if the precision budget allows.
    w = make_semi_orthogonal_weight(kw, out_spatial, in_spatial)
    x = make_spd_batch(kx, (batch, channels), in_spatial)

    z = jax.block_until_ready(bimap_any_batch(x, w))
    z_ref = jnp.einsum("oi,...ij,pj->...op", w, x, w)
    assert z.shape == (batch, channels, out_spatial, out_spatial)
    assert jnp.allclose(z, z_ref, atol=1e-3, rtol=1e-3)

    # Exercise the batch-padding path (batch not a multiple of the slab size).
    x_odd = x.reshape(-1, in_spatial, in_spatial)[:3]
    z_odd = jax.block_until_ready(bimap(x_odd, w))
    z_odd_ref = jnp.einsum("oi,bij,pj->bop", w, x_odd, w)
    assert jnp.allclose(z_odd, z_odd_ref, atol=1e-3, rtol=1e-3)

    print("KERNEL_OK")
</pallas_src>

<mosaic_0001>
module attributes {stable_mosaic.version = 11 : i64} {
  func.func @_bimap_kernel(%arg0: i32, %arg1: memref<8x256xf32, #tpu.memory_space<vmem>>, %arg2: memref<64x256xf32, #tpu.memory_space<vmem>>, %arg3: memref<8x64xf32, #tpu.memory_space<vmem>>) attributes {dimension_semantics = [#tpu.dimension_semantics<parallel>], iteration_bounds = array<i64: 1>, scalar_prefetch = 0 : i64, scratch_operands = 0 : i64, tpu.core_type = #tpu.core_type<tc>, window_params = [{transform_indices = @transform_0, window_bounds = array<i64: 8, 256>}, {pipeline_mode = #tpu.pipeline_mode<synchronous>, transform_indices = @transform_1, window_bounds = array<i64: 64, 256>}, {transform_indices = @transform_2, window_bounds = array<i64: 8, 64>}]} {
    %c0 = arith.constant 0 : index
    %c0_0 = arith.constant 0 : index
    %0 = vector.load %arg1[%c0, %c0_0] : memref<8x256xf32, #tpu.memory_space<vmem>>, vector<8x256xf32>
    %c0_1 = arith.constant 0 : index
    %c0_2 = arith.constant 0 : index
    %1 = vector.load %arg2[%c0_1, %c0_2] : memref<64x256xf32, #tpu.memory_space<vmem>>, vector<64x256xf32>
    %cst = arith.constant dense<0.000000e+00> : vector<8x64xf32>
    %2 = tpu.matmul %0, %1, %cst {dimension_numbers = #tpu.dot_dimension_numbers<[1], [1], [0], [0], [0, 0, 1, 0], [], []>} : vector<8x256xf32>, vector<64x256xf32>, vector<8x64xf32> -> vector<8x64xf32>
    %c0_3 = arith.constant 0 : index
    %c0_4 = arith.constant 0 : index
    %3 = vector.load %arg3[%c0_3, %c0_4] : memref<8x64xf32, #tpu.memory_space<vmem>>, vector<8x64xf32>
    tpu.vector_store %arg3[%c0_3, %c0_4], %2 {strides = array<i32>} : memref<8x64xf32, #tpu.memory_space<vmem>>, vector<8x64xf32>,
    return
  }
  func.func @transform_0(%arg0: i32) -> (i32, i32) {
    %c0_i32 = arith.constant 0 : i32
    %c0_i32_0 = arith.constant 0 : i32
    return %arg0, %c0_i32 : i32, i32
  }
  func.func @transform_1(%arg0: i32) -> (i32, i32) {
    %c0_i32 = arith.constant 0 : i32
    %c0_i32_0 = arith.constant 0 : i32
    %c0_i32_1 = arith.constant 0 : i32
    return %c0_i32, %c0_i32_0 : i32, i32
  }
  func.func @transform_2(%arg0: i32) -> (i32, i32) {
    %c0_i32 = arith.constant 0 : i32
    %c0_i32_0 = arith.constant 0 : i32
    return %arg0, %c0_i32 : i32, i32
  }
}

</mosaic_0001>

<llo_original>
// kernel: bimap.1
$region0: #{bimap.1}
  #allocation0 [shape = 'u32[]', space=smem, size = 0x4, offset = 0x4, fixed_abs, tag = 'smem constant byte address 0x4 - core index']
  #allocation1 [shape = 'u32[144,128]{1,0:T(1,128)}', space=vmem, size = 0x12000, scoped, tag = 'internal scratch']
  %s0 = inlined_call_operand.vmem [shape: f32[8,256], index: 0, kind: input, shape index: {}]
  %s1 = inlined_call_operand.vmem [shape: f32[64,256], index: 1, kind: input, shape index: {}]
  %s2 = inlined_call_operand.vmem [shape: f32[8,64], index: 2, kind: output, shape index: {}]
  %s3 = sld [smem:[#allocation0]]
  $region18: #{bimap.1} parent=0
    _
  %s5 = ssub.s32 1, %s3
  %s6 = scalar_select 0, %s5, %s3
  // Predicated region
  $region2: #{bimap.1} parent=0 // pred_check
    _
  $region3: #{bimap.1} parent=0 // pred_check_branch
    %8 = sbr.rel (0) target = $region5
  $region4: #{bimap.1} parent=0 // pred_region
    _
  $region5: #{bimap.1} parent=0 // pred_fallthru
    _
  // Predicated region
  $region6: #{bimap.1} parent=0 // pred_check
    _
  $region7: #{bimap.1} parent=0 // pred_check_branch
    %10 = sbr.rel (0) target = $region9
  $region8: #{bimap.1} parent=0 // pred_region
    _
  $region9: #{bimap.1} parent=0 // pred_fallthru
    _
  %v11 = vld [vmem:[%s0] sm:$0xff]
  %v12 = vld [vmem:[%s0 + $0x8] sm:$0xff]
  %v13 = vld [vmem:[%s1] sm:$0xff]
  %v14 = vld [vmem:[%s1 + $0x8] sm:$0xff]
  %v15 = vld [vmem:[%s1 + $0x10] sm:$0xff]
  %v16 = vld [vmem:[%s1 + $0x18] sm:$0xff]
  %v17 = vld [vmem:[%s1 + $0x20] sm:$0xff]
  %v18 = vld [vmem:[%s1 + $0x28] sm:$0xff]
  %v19 = vld [vmem:[%s1 + $0x30] sm:$0xff]
  %v20 = vld [vmem:[%s1 + $0x38] sm:$0xff]
  %v21 = vld [vmem:[%s1 + $0x40] sm:$0xff]
  %v22 = vld [vmem:[%s1 + $0x48] sm:$0xff]
  %v23 = vld [vmem:[%s1 + $0x50] sm:$0xff]
  %v24 = vld [vmem:[%s1 + $0x58] sm:$0xff]
  %v25 = vld [vmem:[%s1 + $0x60] sm:$0xff]
  %v26 = vld [vmem:[%s1 + $0x68] sm:$0xff]
  %v27 = vld [vmem:[%s1 + $0x70] sm:$0xff]
  %v28 = vld [vmem:[%s1 + $0x78] sm:$0xff]
  %29 = vmatprep.subr.mxu0 %v14
  %30 = vmatpush1.xpose.msra.mxu0 %v13
  %31 = vmatprep.subr.mxu0 %v16
  %32 = vmatpush1.xpose.msra.mxu0 %v15
  %33 = vmatprep.subr.mxu0 %v18
  %34 = vmatpush1.xpose.msra.mxu0 %v17
  %35 = vmatprep.subr.mxu0 %v20
  %36 = vmatpush1.xpose.msra.mxu0 %v19
  %37 = vmatprep.subr.mxu0 %v22
  %38 = vmatpush1.xpose.msra.mxu0 %v21
  %39 = vmatprep.subr.mxu0 %v24
  %40 = vmatpush1.xpose.msra.mxu0 %v23
  %41 = vmatprep.subr.mxu0 %v26
  %42 = vmatpush1.xpose.msra.mxu0 %v25
  %43 = vmatprep.subr.mxu0 %v28
  %44 = vmatpush1.xpose.msra.mxu0 %v27
  %45 = vmatprep.subr.mxu0 0.0
  %46 = vmatpush1.xpose.msra.mxu0 0.0
  %47 = vmatprep.subr.mxu0 0.0
  %48 = vmatpush1.xpose.msra.mxu0 0.0
  %49 = vmatprep.subr.mxu0 0.0
  %50 = vmatpush1.xpose.msra.mxu0 0.0
  %51 = vmatprep.subr.mxu0 0.0
  %52 = vmatpush1.xpose.msra.mxu0 0.0
  %53 = vmatprep.subr.mxu0 0.0
  %54 = vmatpush1.xpose.msra.mxu0 0.0
  %55 = vmatprep.subr.mxu0 0.0
  %56 = vmatpush1.xpose.msra.mxu0 0.0
  %57 = vmatprep.subr.mxu0 0.0
  %58 = vmatpush1.xpose.msra.mxu0 0.0
  %59 = vmatprep.subr.mxu0 0.0
  %60 = vmatpush1.xpose.msra.mxu0 0.0
  %61 = vmatprep.subr.mxu0 0.0
  %62 = vmatpush1.xpose.msra.mxu0 0.0
  %63 = vmatprep.subr.mxu0 0.0
  %64 = vmatpush1.xpose.msra.mxu0 0.0
  %65 = vmatprep.subr.mxu0 0.0
  %66 = vmatpush1.xpose.msra.mxu0 0.0
  %67 = vmatprep.subr.mxu0 0.0
  %68 = vmatpush1.xpose.msra.mxu0 0.0
  %69 = vmatprep.subr.mxu0 0.0
  %70 = vmatpush1.xpose.msra.mxu0 0.0
  %71 = vmatprep.subr.mxu0 0.0
  %72 = vmatpush1.xpose.msra.mxu0 0.0
  %73 = vmatprep.subr.mxu0 0.0
  %74 = vmatpush1.xpose.msra.mxu0 0.0
  %75 = vmatprep.subr.mxu0 0.0
  %76 = vmatpush1.xpose.msra.mxu0 0.0
  %77 = vmatprep.subr.mxu0 0.0
  %78 = vmatpush1.xpose.msra.mxu0 0.0
  %79 = vmatprep.subr.mxu0 0.0
  %80 = vmatpush1.xpose.msra.mxu0 0.0
  %81 = vmatprep.subr.mxu0 0.0
  %82 = vmatpush1.xpose.msra.mxu0 0.0
  %83 = vmatprep.subr.mxu0 0.0
  %84 = vmatpush1.xpose.msra.mxu0 0.0
  %85 = vmatprep.subr.mxu0 0.0
  %86 = vmatpush1.xpose.msra.mxu0 0.0
  %87 = vmatprep.subr.mxu0 0.0
  %88 = vmatpush1.xpose.msra.mxu0 0.0
  %89 = vmatprep.subr.mxu0 0.0
  %90 = vmatpush1.xpose.msra.mxu0 0.0
  %91 = vmatprep.subr.mxu0 0.0
  %92 = vmatpush1.xpose.msra.mxu0 0.0
  %93 = vmatprep.mubr.f32.mxu0 %v12
  %94 = vmatmul.mubr.f32.gmra.mrb[0].mxu0 %v11
  %v95 = vpop.f32.mrb[0].mxu0
  %v96 = vadd.f32 0.0, %v95
  %v97 = vpop.f32.mrb[0].mxu0
  %98 = vdwg.mxu0
  %vm99 = vcmask 523264
  %100 = vst.msk [vmem:[%s2] sm:$0xff] %vm99, %v96
  // Predicated region
  $region10: #{bimap.1} parent=0 // pred_check
    _
  $region11: #{bimap.1} parent=0 // pred_check_branch
    %102 = sbr.rel (0) target = $region13
  $region12: #{bimap.1} parent=0 // pred_region
    _
  $region13: #{bimap.1} parent=0 // pred_fallthru
    _
  // Predicated region
  $region14: #{bimap.1} parent=0 // pred_check
    _
  $region15: #{bimap.1} parent=0 // pred_check_branch
    %104 = sbr.rel (0) target = $region17
  $region16: #{bimap.1} parent=0 // pred_region
    _
  $region17: #{bimap.1} parent=0 // pred_fallthru
    _

</llo_original>
